<compile_context>
chip_gen: v7x
topology: tpu7x:2x2x1
jax: 0.10.0
libtpu: 0.0.40
codegen_flags: <defaults>
</compile_context>

<pallas_src>
import functools

import jax
import jax.numpy as jnp
from jax.experimental import pallas as pl
from jax.experimental.pallas import tpu as pltpu

FEAT = 128               # lane width of the packed parameter slab
P_ROWS = 3 * FEAT + 8    # 3 weight blocks (128 rows each) + 8-row bias block = 392
_TM_MAX = 1024           # max batch-tile rows (large tiles amortize per-step cost)
_SMALL_BATCH = 64        # below this, plain XLA dense is as fast as a kernel launch


def _round_up(n, m):
    return ((n + m - 1) // m) * m


def _choose_tiling(batch):
    """Pick (tm, b_pad): batch-tile rows and padded batch size.

    * Tiles are kept as large as possible (up to 1024 rows) because the kernel
      is HBM/overhead bound.
    * For batch >= 1024 the grid is split into an even number of >= 2 steps so
      the "parallel" axis actually shards across v7x's two TensorCores.
    * Padding waste stays small (<= ~8 rows per grid step).
    """
    b8 = _round_up(max(batch, 1), 8)
    if b8 < 1024:
        return b8, b8                          # a single tile covers the batch
    n_steps = max(2, -(-b8 // _TM_MAX))        # ceil-div
    if n_steps % 2:
        n_steps += 1                           # even split -> balanced dual-TC work
    tm = _round_up(-(-b8 // n_steps), 8)
    return tm, tm * n_steps


def _dqn_kernel(x_ref, p_ref, o_ref, *, k1, action_size):
    """Fused MLP: relu(relu(x@W1+b1)@W2+b2)@W3+b3 with a narrow Q-value store."""
    cdt = p_ref.dtype

    x = x_ref[...]                               # (tm, k1) -- true input width
    w1 = p_ref[0:k1, :]                          # (k1, 128)  static, sublane-aligned
    w2 = p_ref[128:256, :]                       # (128, 128)
    w3 = p_ref[256:384, :]                       # (128, 128)
    b = p_ref[384:392, :].astype(jnp.float32)    # (8, 128)   bias block

    # fc1 + relu  (K = k1, not a zero-padded 128)
    h1 = jnp.dot(x, w1, preferred_element_type=jnp.float32) + b[0:1, :]
    h1 = jnp.maximum(h1, 0.0).astype(cdt)

    # fc2 + relu
    h2 = jnp.dot(h1, w2, preferred_element_type=jnp.float32) + b[1:2, :]
    h2 = jnp.maximum(h2, 0.0).astype(cdt)

    # fc3 (no activation)
    q = jnp.dot(h2, w3, preferred_element_type=jnp.float32) + b[2:3, :]

    # Narrow (tm, action_size) store -> no wrapper-side slice round trip.
    o_ref[...] = q[:, 0:action_size].astype(o_ref.dtype)


def pack_dqn_params(w1, b1, w2, b2, w3, b3, dtype=jnp.float32):
    """Pack [in,out]-layout weights + biases into one padded [392, 128] slab.

    Zero padding keeps the math exact: padded x columns hit zero weight rows,
    padded hidden lanes get zero bias and stay zero through relu.
    """
    slab = jnp.zeros((P_ROWS, FEAT), dtype)
    slab = slab.at[0:w1.shape[0], 0:w1.shape[1]].set(w1.astype(dtype))
    slab = slab.at[128:128 + w2.shape[0], 0:w2.shape[1]].set(w2.astype(dtype))
    slab = slab.at[256:256 + w3.shape[0], 0:w3.shape[1]].set(w3.astype(dtype))
    slab = slab.at[384, 0:b1.shape[-1]].set(b1.reshape(-1).astype(dtype))
    slab = slab.at[385, 0:b2.shape[-1]].set(b2.reshape(-1).astype(dtype))
    slab = slab.at[386, 0:b3.shape[-1]].set(b3.reshape(-1).astype(dtype))
    return slab


@functools.partial(jax.jit, static_argnames=("action_size", "use_pallas"))
def dqn_forward(x, param_slab, action_size, use_pallas=None):
    """DQN forward. `param_slab` comes from pack_dqn_params (pack once, reuse)."""
    batch, state_size = x.shape
    cdt = param_slab.dtype

    if use_pallas is None:
        use_pallas = batch >= _SMALL_BATCH       # acting path: skip kernel launch

    if not use_pallas:
        # Plain XLA dense path (fastest for tiny acting batches).
        h = x.astype(cdt)
        h = jnp.maximum(
            jnp.dot(h, param_slab[0:state_size, :],
                    preferred_element_type=jnp.float32)
            + param_slab[384, :].astype(jnp.float32), 0.0)
        h = jnp.maximum(
            jnp.dot(h.astype(cdt), param_slab[128:256, :],
                    preferred_element_type=jnp.float32)
            + param_slab[385, :].astype(jnp.float32), 0.0)
        q = (jnp.dot(h.astype(cdt), param_slab[256:384, :],
                     preferred_element_type=jnp.float32)
             + param_slab[386, :].astype(jnp.float32))
        return q[:, :action_size]

    # ------------------ Pallas path (replay-sized batches) ------------------
    k1 = _round_up(state_size, 8)                # fc1 contraction, sublane-aligned
    tm, b_pad = _choose_tiling(batch)

    xk = x.astype(cdt)
    if b_pad != batch or k1 != state_size:
        xk = jnp.pad(xk, ((0, b_pad - batch), (0, k1 - state_size)))

    kernel = functools.partial(_dqn_kernel, k1=k1, action_size=action_size)
    out = pl.pallas_call(
        kernel,
        out_shape=jax.ShapeDtypeStruct((b_pad, action_size), jnp.float32),
        grid=(b_pad // tm,),
        in_specs=[
            pl.BlockSpec((tm, k1), lambda i: (i, 0)),        # activations stream
            pl.BlockSpec((P_ROWS, FEAT), lambda i: (0, 0)),  # params VMEM-resident
        ],
        out_specs=pl.BlockSpec((tm, action_size), lambda i: (i, 0)),
        compiler_params=pltpu.CompilerParams(
            dimension_semantics=("parallel",)),              # dual-TC split on v7x
    )(xk, param_slab)

    return out if b_pad == batch else out[:batch]


def init_dqn_params(key, state_size, action_size):
    """Deterministic init mirroring nn.Linear's uniform(-1/sqrt(fan_in), +) init.

    Weights are returned in [in_features, out_features] layout (transposed vs.
    PyTorch), biases as flat [out_features] vectors.
    """
    dims = [(state_size, 64), (64, 32), (32, action_size)]
    params = []
    for (fan_in, fan_out) in dims:
        key, kw, kb = jax.random.split(key, 3)
        bound = 1.0 / jnp.sqrt(jnp.float32(fan_in))
        w = jax.random.uniform(kw, (fan_in, fan_out), jnp.float32, -bound, bound)
        b = jax.random.uniform(kb, (fan_out,), jnp.float32, -bound, bound)
        params.extend([w, b])
    return params


if __name__ == "__main__":
    state_size = 16
    action_size = 4

    key = jax.random.PRNGKey(0)
    key, kxs, kxl = jax.random.split(key, 3)
    x_small = jax.random.normal(kxs, (2, state_size), jnp.float32)      # acting batch
    x_large = jax.random.normal(kxl, (1024, state_size), jnp.float32)   # replay batch

    w1, b1, w2, b2, w3, b3 = init_dqn_params(key, state_size, action_size)

    # Pack parameters once (amortized across calls in a real acting/training loop).
    param_slab = jax.block_until_ready(pack_dqn_params(w1, b1, w2, b2, w3, b3))

    def reference(xin):
        h = jnp.maximum(xin @ w1 + b1[None, :], 0.0)
        h = jnp.maximum(h @ w2 + b2[None, :], 0.0)
        return h @ w3 + b3[None, :]

    # 1) Pallas kernel on the tiny acting batch (forced: single 8-row tile).
    q_small = jax.block_until_ready(
        dqn_forward(x_small, param_slab, action_size, use_pallas=True))
    assert q_small.shape == (2, action_size)
    assert jnp.allclose(q_small, reference(x_small), atol=2e-2, rtol=2e-2)

    # 2) Pallas kernel on a replay-sized batch: 2 "parallel" grid steps of 512 rows.
    q_large = jax.block_until_ready(
        dqn_forward(x_large, param_slab, action_size))
    assert q_large.shape == (1024, action_size)
    assert jnp.allclose(q_large, reference(x_large), atol=2e-2, rtol=2e-2)

    # 3) Small-batch XLA fallback agrees with the kernel path.
    q_act = jax.block_until_ready(
        dqn_forward(x_small, param_slab, action_size, use_pallas=False))
    assert jnp.allclose(q_act, q_small, atol=2e-2, rtol=2e-2)

    print("KERNEL_OK")
</pallas_src>

<mosaic_0001>
module attributes {stable_mosaic.version = 11 : i64} {
  func.func @_dqn_kernel(%arg0: i32, %arg1: memref<8x16xf32, #tpu.memory_space<vmem>>, %arg2: memref<392x128xf32, #tpu.memory_space<vmem>>, %arg3: memref<8x4xf32, #tpu.memory_space<vmem>>) attributes {dimension_semantics = [#tpu.dimension_semantics<parallel>], iteration_bounds = array<i64: 1>, scalar_prefetch = 0 : i64, scratch_operands = 0 : i64, tpu.core_type = #tpu.core_type<tc>, window_params = [{transform_indices = @transform_0, window_bounds = array<i64: 8, 16>}, {pipeline_mode = #tpu.pipeline_mode<synchronous>, transform_indices = @transform_1, window_bounds = array<i64: 392, 128>}, {transform_indices = @transform_2, window_bounds = array<i64: 8, 4>}]} {
    %c0 = arith.constant 0 : index
    %c0_0 = arith.constant 0 : index
    %0 = vector.load %arg1[%c0, %c0_0] : memref<8x16xf32, #tpu.memory_space<vmem>>, vector<8x16xf32>
    %c0_1 = arith.constant 0 : index
    %c0_2 = arith.constant 0 : index
    %1 = vector.load %arg2[%c0_1, %c0_2] : memref<392x128xf32, #tpu.memory_space<vmem>>, vector<16x128xf32>
    %c128 = arith.constant 128 : index
    %c0_3 = arith.constant 0 : index
    %2 = vector.load %arg2[%c128, %c0_3] : memref<392x128xf32, #tpu.memory_space<vmem>>, vector<128x128xf32>
    %c256 = arith.constant 256 : index
    %c0_4 = arith.constant 0 : index
    %3 = vector.load %arg2[%c256, %c0_4] : memref<392x128xf32, #tpu.memory_space<vmem>>, vector<128x128xf32>
    %c384 = arith.constant 384 : index
    %c0_5 = arith.constant 0 : index
    %4 = vector.load %arg2[%c384, %c0_5] : memref<392x128xf32, #tpu.memory_space<vmem>>, vector<8x128xf32>
    %cst = arith.constant dense<0.000000e+00> : vector<8x128xf32>
    %5 = tpu.matmul %0, %1, %cst {dimension_numbers = #tpu.dot_dimension_numbers<[1], [0], [0], [1], [0, 0, 1, 1], [], []>} : vector<8x16xf32>, vector<16x128xf32>, vector<8x128xf32> -> vector<8x128xf32>
    %6 = vector.extract_strided_slice %4 {offsets = [0, 0], sizes = [1, 128], strides = [1, 1]} : vector<8x128xf32> to vector<1x128xf32>
    %7 = vector.broadcast %6 : vector<1x128xf32> to vector<8x128xf32>
    %8 = arith.addf %5, %7 : vector<8x128xf32>
    %cst_6 = arith.constant 0.000000e+00 : f32
    %9 = vector.broadcast %cst_6 : f32 to vector<8x128xf32>
    %10 = arith.maximumf %8, %9 : vector<8x128xf32>
    %cst_7 = arith.constant dense<0.000000e+00> : vector<8x128xf32>
    %11 = tpu.matmul %10, %2, %cst_7 {dimension_numbers = #tpu.dot_dimension_numbers<[1], [0], [0], [1], [0, 0, 1, 1], [], []>} : vector<8x128xf32>, vector<128x128xf32>, vector<8x128xf32> -> vector<8x128xf32>
    %12 = vector.extract_strided_slice %4 {offsets = [1, 0], sizes = [1, 128], strides = [1, 1]} : vector<8x128xf32> to vector<1x128xf32>
    %13 = vector.broadcast %12 : vector<1x128xf32> to vector<8x128xf32>
    %14 = arith.addf %11, %13 : vector<8x128xf32>
    %cst_8 = arith.constant 0.000000e+00 : f32
    %15 = vector.broadcast %cst_8 : f32 to vector<8x128xf32>
    %16 = arith.maximumf %14, %15 : vector<8x128xf32>
    %cst_9 = arith.constant dense<0.000000e+00> : vector<8x128xf32>
    %17 = tpu.matmul %16, %3, %cst_9 {dimension_numbers = #tpu.dot_dimension_numbers<[1], [0], [0], [1], [0, 0, 1, 1], [], []>} : vector<8x128xf32>, vector<128x128xf32>, vector<8x128xf32> -> vector<8x128xf32>
    %18 = vector.extract_strided_slice %4 {offsets = [2, 0], sizes = [1, 128], strides = [1, 1]} : vector<8x128xf32> to vector<1x128xf32>
    %19 = vector.broadcast %18 : vector<1x128xf32> to vector<8x128xf32>
    %20 = arith.addf %17, %19 : vector<8x128xf32>
    %21 = vector.extract_strided_slice %20 {offsets = [0, 0], sizes = [8, 4], strides = [1, 1]} : vector<8x128xf32> to vector<8x4xf32>
    %c0_10 = arith.constant 0 : index
    %c0_11 = arith.constant 0 : index
    %22 = vector.load %arg3[%c0_10, %c0_11] : memref<8x4xf32, #tpu.memory_space<vmem>>, vector<8x4xf32>
    tpu.vector_store %arg3[%c0_10, %c0_11], %21 {strides = array<i32>} : memref<8x4xf32, #tpu.memory_space<vmem>>, vector<8x4xf32>,
    return
  }
  func.func @transform_0(%arg0: i32) -> (i32, i32) {
    %c0_i32 = arith.constant 0 : i32
    %c0_i32_0 = arith.constant 0 : i32
    return %arg0, %c0_i32 : i32, i32
  }
  func.func @transform_1(%arg0: i32) -> (i32, i32) {
    %c0_i32 = arith.constant 0 : i32
    %c0_i32_0 = arith.constant 0 : i32
    %c0_i32_1 = arith.constant 0 : i32
    return %c0_i32, %c0_i32_0 : i32, i32
  }
  func.func @transform_2(%arg0: i32) -> (i32, i32) {
    %c0_i32 = arith.constant 0 : i32
    %c0_i32_0 = arith.constant 0 : i32
    return %arg0, %c0_i32 : i32, i32
  }
}

</mosaic_0001>

<llo_original>
// kernel: dqn_forward.1
$region0: #{dqn_forward.1}
  #allocation0 [shape = 'u32[]', space=smem, size = 0x4, offset = 0x4, fixed_abs, tag = 'smem constant byte address 0x4 - core index']
  #allocation1 [shape = 'u32[144,128]{1,0:T(1,128)}', space=vmem, size = 0x12000, scoped, tag = 'internal scratch']
  %s0 = inlined_call_operand.vmem [shape: f32[8,16], index: 0, kind: input, shape index: {}]
  %s1 = inlined_call_operand.hbm [shape: f32[392,128], index: 1, kind: input, shape index: {}]
  %s2 = inlined_call_operand.vmem [shape: f32[8,4], index: 2, kind: output, shape index: {}]
  %s3 = sld [smem:[#allocation0]]
  $region22: #{dqn_forward.1} parent=0
    _
  %s5 = ssub.s32 1, %s3
  %s6 = scalar_select 0, %s5, %s3
  $region1: #{dqn_forward.1} parent=0
    #allocation2 [shape = 'u8[200704]{0}', space=vmem, size = 0x31000, scoped, tag = 'input window, operand 1, single buffered']
    #allocation3 [shape = 's32[1]{0}', space=sflag, size = 0x4, scoped, tag = 'scoped memory for dqn_forward.1']
    %7 = vsyncpa [#allocation3], 0
    // Predicated region
    $region2: #{dqn_forward.1} parent=1 // pred_check
      _
    $region3: #{dqn_forward.1} parent=1 // pred_check_branch
      %9 = sbr.rel (0) target = $region5
    $region4: #{dqn_forward.1} parent=1 // pred_region
      _
    $region5: #{dqn_forward.1} parent=1 // pred_fallthru
      _
    // Predicated region
    $region6: #{dqn_forward.1} parent=1 // pred_check
      _
    $region7: #{dqn_forward.1} parent=1 // pred_check_branch
      %11 = sbr.rel (0) target = $region9
    $region8: #{dqn_forward.1} parent=1 // pred_region
      %s13 = ssub.s32 6272, 6272
      %14 = vsyncadd [#allocation3], %s13
      %s15 = sshll.u32 [#allocation2], 4
      %s16 = int_to_ptr.vmem [resolvable:$true] %s15
      %21 = dma.hbm_to_vmem [thread:$0]  %s1, 6272, %s16, [#allocation3], 128, 128, 8
    $region9: #{dqn_forward.1} parent=1 // pred_fallthru
      _
    // Predicated region
    $region10: #{dqn_forward.1} parent=1 // pred_check
      _
    $region11: #{dqn_forward.1} parent=1 // pred_check_branch
      %23 = sbr.rel (0) target = $region13
    $region12: #{dqn_forward.1} parent=1 // pred_region
      %24 = dma.done [#allocation3], 6272
    $region13: #{dqn_forward.1} parent=1 // pred_fallthru
      _
    %v25 = vld [vmem:[%s0] sm:$0xff]
    %v26 = vld [vmem:[#allocation2] sm:$0xff]
    %v27 = vld [vmem:[#allocation2 + $0x8] sm:$0xff]
    %v28 = vld [vmem:[#allocation2 + $0x80] sm:$0xff]
    %v29 = vld [vmem:[#allocation2 + $0x88] sm:$0xff]
    %v30 = vld [vmem:[#allocation2 + $0x90] sm:$0xff]
    %v31 = vld [vmem:[#allocation2 + $0x98] sm:$0xff]
    %v32 = vld [vmem:[#allocation2 + $0xa0] sm:$0xff]
    %v33 = vld [vmem:[#allocation2 + $0xa8] sm:$0xff]
    %v34 = vld [vmem:[#allocation2 + $0xb0] sm:$0xff]
    %v35 = vld [vmem:[#allocation2 + $0xb8] sm:$0xff]
    %v36 = vld [vmem:[#allocation2 + $0xc0] sm:$0xff]
    %v37 = vld [vmem:[#allocation2 + $0xc8] sm:$0xff]
    %v38 = vld [vmem:[#allocation2 + $0xd0] sm:$0xff]
    %v39 = vld [vmem:[#allocation2 + $0xd8] sm:$0xff]
    %v40 = vld [vmem:[#allocation2 + $0xe0] sm:$0xff]
    %v41 = vld [vmem:[#allocation2 + $0xe8] sm:$0xff]
    %v42 = vld [vmem:[#allocation2 + $0xf0] sm:$0xff]
    %v43 = vld [vmem:[#allocation2 + $0xf8] sm:$0xff]
    %v44 = vld [vmem:[#allocation2 + $0x100] sm:$0xff]
    %v45 = vld [vmem:[#allocation2 + $0x108] sm:$0xff]
    %v46 = vld [vmem:[#allocation2 + $0x110] sm:$0xff]
    %v47 = vld [vmem:[#allocation2 + $0x118] sm:$0xff]
    %v48 = vld [vmem:[#allocation2 + $0x120] sm:$0xff]
    %v49 = vld [vmem:[#allocation2 + $0x128] sm:$0xff]
    %v50 = vld [vmem:[#allocation2 + $0x130] sm:$0xff]
    %v51 = vld [vmem:[#allocation2 + $0x138] sm:$0xff]
    %v52 = vld [vmem:[#allocation2 + $0x140] sm:$0xff]
    %v53 = vld [vmem:[#allocation2 + $0x148] sm:$0xff]
    %v54 = vld [vmem:[#allocation2 + $0x150] sm:$0xff]
    %v55 = vld [vmem:[#allocation2 + $0x158] sm:$0xff]
    %v56 = vld [vmem:[#allocation2 + $0x160] sm:$0xff]
    %v57 = vld [vmem:[#allocation2 + $0x168] sm:$0xff]
    %v58 = vld [vmem:[#allocation2 + $0x170] sm:$0xff]
    %v59 = vld [vmem:[#allocation2 + $0x178] sm:$0xff]
    %v60 = vld [vmem:[#allocation2 + $0x180] sm:$0xff]
    %v61 = vlaneseq
    %v62 = vshrl.u32 %v61, 7
    %v63 = vsub.s32 0, %v62
    %v64 = vrot.slane %v60, %v63
    %vm65 = vcmask 130048
    %v67 = vsel %vm65, %v25, 0
    %69 = vmatprep.subr.mxu0 0.0
    %70 = vmatpush1.msra.mxu0 %v26
    %71 = vmatprep.subr.mxu0 0.0
    %72 = vmatpush1.msra.mxu0 %v27
    %73 = vmatprep.subr.mxu0 0.0
    %74 = vmatpush1.msra.mxu0 0.0
    %75 = vmatprep.subr.mxu0 0.0
    %76 = vmatpush1.msra.mxu0 0.0
    %77 = vmatprep.subr.mxu0 0.0
    %78 = vmatpush1.msra.mxu0 0.0
    %79 = vmatprep.subr.mxu0 0.0
    %80 = vmatpush1.msra.mxu0 0.0
    %81 = vmatprep.subr.mxu0 0.0
    %82 = vmatpush1.msra.mxu0 0.0
    %83 = vmatprep.subr.mxu0 0.0
    %84 = vmatpush1.msra.mxu0 0.0
    %85 = vmatprep.subr.mxu0 0.0
    %86 = vmatpush1.msra.mxu0 0.0
    %87 = vmatprep.subr.mxu0 0.0
    %88 = vmatpush1.msra.mxu0 0.0
    %89 = vmatprep.subr.mxu0 0.0
    %90 = vmatpush1.msra.mxu0 0.0
    %91 = vmatprep.subr.mxu0 0.0
    %92 = vmatpush1.msra.mxu0 0.0
    %93 = vmatprep.subr.mxu0 0.0
    %94 = vmatpush1.msra.mxu0 0.0
    %95 = vmatprep.subr.mxu0 0.0
    %96 = vmatpush1.msra.mxu0 0.0
    %97 = vmatprep.subr.mxu0 0.0
    %98 = vmatpush1.msra.mxu0 0.0
    %99 = vmatprep.subr.mxu0 0.0
    %100 = vmatpush1.msra.mxu0 0.0
    %101 = vmatprep.subr.mxu0 0.0
    %102 = vmatpush1.msra.mxu0 0.0
    %103 = vmatprep.subr.mxu0 0.0
    %104 = vmatpush1.msra.mxu0 0.0
    %105 = vmatprep.subr.mxu0 0.0
    %106 = vmatpush1.msra.mxu0 0.0
    %107 = vmatprep.subr.mxu0 0.0
    %108 = vmatpush1.msra.mxu0 0.0
    %109 = vmatprep.subr.mxu0 0.0
    %110 = vmatpush1.msra.mxu0 0.0
    %111 = vmatprep.subr.mxu0 0.0
    %112 = vmatpush1.msra.mxu0 0.0
    %113 = vmatprep.subr.mxu0 0.0
    %114 = vmatpush1.msra.mxu0 0.0
    %115 = vmatprep.subr.mxu0 0.0
    %116 = vmatpush1.msra.mxu0 0.0
    %117 = vmatprep.subr.mxu0 0.0
    %118 = vmatpush1.msra.mxu0 0.0
    %119 = vmatprep.subr.mxu0 0.0
    %120 = vmatpush1.msra.mxu0 0.0
    %121 = vmatprep.subr.mxu0 0.0
    %122 = vmatpush1.msra.mxu0 0.0
    %123 = vmatprep.subr.mxu0 0.0
    %124 = vmatpush1.msra.mxu0 0.0
    %125 = vmatprep.subr.mxu0 0.0
    %126 = vmatpush1.msra.mxu0 0.0
    %127 = vmatprep.subr.mxu0 0.0
    %128 = vmatpush1.msra.mxu0 0.0
    %129 = vmatprep.subr.mxu0 0.0
    %130 = vmatpush1.msra.mxu0 0.0
    %131 = vmatprep.subr.mxu0 0.0
    %132 = vmatpush1.msra.mxu0 0.0
    %133 = vmatprep.mubr.f32.mxu0 0.0
    %134 = vmatmul.mubr.f32.gmra.mrb[0].mxu0 %v67
    %v135 = vpop.f32.mrb[0].mxu0
    %v136 = vadd.f32 %v64, %v135
    %v137 = vpop.f32.mrb[0].mxu0
    %138 = vdwg.mxu0
    %v139 = vmax.f32 %v136, 0.0
    %v140 = vlaneseq
    %v141 = vshrl.u32 %v140, 7
    %v142 = vsub.s32 1, %v141
    %v143 = vrot.slane %v60, %v142
    %144 = vmatprep.subr.mxu0 0.0
    %145 = vmatpush1.msra.mxu0 %v28
    %146 = vmatprep.subr.mxu0 0.0
    %147 = vmatpush1.msra.mxu0 %v29
    %148 = vmatprep.subr.mxu0 0.0
    %149 = vmatpush1.msra.mxu0 %v30
    %150 = vmatprep.subr.mxu0 0.0
    %151 = vmatpush1.msra.mxu0 %v31
    %152 = vmatprep.subr.mxu0 0.0
    %153 = vmatpush1.msra.mxu0 %v32
    %154 = vmatprep.subr.mxu0 0.0
    %155 = vmatpush1.msra.mxu0 %v33
    %156 = vmatprep.subr.mxu0 0.0
    %157 = vmatpush1.msra.mxu0 %v34
    %158 = vmatprep.subr.mxu0 0.0
    %159 = vmatpush1.msra.mxu0 %v35
    %160 = vmatprep.subr.mxu0 0.0
    %161 = vmatpush1.msra.mxu0 %v36
    %162 = vmatprep.subr.mxu0 0.0
    %163 = vmatpush1.msra.mxu0 %v37
    %164 = vmatprep.subr.mxu0 0.0
    %165 = vmatpush1.msra.mxu0 %v38
    %166 = vmatprep.subr.mxu0 0.0
    %167 = vmatpush1.msra.mxu0 %v39
    %168 = vmatprep.subr.mxu0 0.0
    %169 = vmatpush1.msra.mxu0 %v40
    %170 = vmatprep.subr.mxu0 0.0
    %171 = vmatpush1.msra.mxu0 %v41
    %172 = vmatprep.subr.mxu0 0.0
    %173 = vmatpush1.msra.mxu0 %v42
    %174 = vmatprep.subr.mxu0 0.0
    %175 = vmatpush1.msra.mxu0 %v43
    %176 = vmatprep.subr.mxu0 0.0
    %177 = vmatpush1.msra.mxu0 0.0
    %178 = vmatprep.subr.mxu0 0.0
    %179 = vmatpush1.msra.mxu0 0.0
    %180 = vmatprep.subr.mxu0 0.0
    %181 = vmatpush1.msra.mxu0 0.0
    %182 = vmatprep.subr.mxu0 0.0
    %183 = vmatpush1.msra.mxu0 0.0
    %184 = vmatprep.subr.mxu0 0.0
    %185 = vmatpush1.msra.mxu0 0.0
    %186 = vmatprep.subr.mxu0 0.0
    %187 = vmatpush1.msra.mxu0 0.0
    %188 = vmatprep.subr.mxu0 0.0
    %189 = vmatpush1.msra.mxu0 0.0
    %190 = vmatprep.subr.mxu0 0.0
    %191 = vmatpush1.msra.mxu0 0.0
    %192 = vmatprep.subr.mxu0 0.0
    %193 = vmatpush1.msra.mxu0 0.0
    %194 = vmatprep.subr.mxu0 0.0
    %195 = vmatpush1.msra.mxu0 0.0
    %196 = vmatprep.subr.mxu0 0.0
    %197 = vmatpush1.msra.mxu0 0.0
    %198 = vmatprep.subr.mxu0 0.0
    %199 = vmatpush1.msra.mxu0 0.0
    %200 = vmatprep.subr.mxu0 0.0
    %201 = vmatpush1.msra.mxu0 0.0
    %202 = vmatprep.subr.mxu0 0.0
    %203 = vmatpush1.msra.mxu0 0.0
    %204 = vmatprep.subr.mxu0 0.0
    %205 = vmatpush1.msra.mxu0 0.0
    %206 = vmatprep.subr.mxu0 0.0
    %207 = vmatpush1.msra.mxu0 0.0
    %208 = vmatprep.mubr.f32.mxu0 0.0
    %209 = vmatmul.mubr.f32.gmra.mrb[0].mxu0 %v139
    %v210 = vpop.f32.mrb[0].mxu0
    %v211 = vadd.f32 %v143, %v210
    %v212 = vpop.f32.mrb[0].mxu0
    %213 = vdwg.mxu0
    %v214 = vmax.f32 %v211, 0.0
    %v215 = vlaneseq
    %v216 = vshrl.u32 %v215, 7
    %v217 = vsub.s32 2, %v216
    %v218 = vrot.slane %v60, %v217
    %219 = vmatprep.subr.mxu0 0.0
    %220 = vmatpush1.msra.mxu0 %v44
    %221 = vmatprep.subr.mxu0 0.0
    %222 = vmatpush1.msra.mxu0 %v45
    %223 = vmatprep.subr.mxu0 0.0
    %224 = vmatpush1.msra.mxu0 %v46
    %225 = vmatprep.subr.mxu0 0.0
    %226 = vmatpush1.msra.mxu0 %v47
    %227 = vmatprep.subr.mxu0 0.0
    %228 = vmatpush1.msra.mxu0 %v48
    %229 = vmatprep.subr.mxu0 0.0
    %230 = vmatpush1.msra.mxu0 %v49
    %231 = vmatprep.subr.mxu0 0.0
    %232 = vmatpush1.msra.mxu0 %v50
    %233 = vmatprep.subr.mxu0 0.0
    %234 = vmatpush1.msra.mxu0 %v51
    %235 = vmatprep.subr.mxu0 0.0
    %236 = vmatpush1.msra.mxu0 %v52
    %237 = vmatprep.subr.mxu0 0.0
    %238 = vmatpush1.msra.mxu0 %v53
    %239 = vmatprep.subr.mxu0 0.0
    %240 = vmatpush1.msra.mxu0 %v54
    %241 = vmatprep.subr.mxu0 0.0
    %242 = vmatpush1.msra.mxu0 %v55
    %243 = vmatprep.subr.mxu0 0.0
    %244 = vmatpush1.msra.mxu0 %v56
    %245 = vmatprep.subr.mxu0 0.0
    %246 = vmatpush1.msra.mxu0 %v57
    %247 = vmatprep.subr.mxu0 0.0
    %248 = vmatpush1.msra.mxu0 %v58
    %249 = vmatprep.subr.mxu0 0.0
    %250 = vmatpush1.msra.mxu0 %v59
    %251 = vmatprep.subr.mxu0 0.0
    %252 = vmatpush1.msra.mxu0 0.0
    %253 = vmatprep.subr.mxu0 0.0
    %254 = vmatpush1.msra.mxu0 0.0
    %255 = vmatprep.subr.mxu0 0.0
    %256 = vmatpush1.msra.mxu0 0.0
    %257 = vmatprep.subr.mxu0 0.0
    %258 = vmatpush1.msra.mxu0 0.0
    %259 = vmatprep.subr.mxu0 0.0
    %260 = vmatpush1.msra.mxu0 0.0
    %261 = vmatprep.subr.mxu0 0.0
    %262 = vmatpush1.msra.mxu0 0.0
    %263 = vmatprep.subr.mxu0 0.0
    %264 = vmatpush1.msra.mxu0 0.0
    %265 = vmatprep.subr.mxu0 0.0
    %266 = vmatpush1.msra.mxu0 0.0
    %267 = vmatprep.subr.mxu0 0.0
    %268 = vmatpush1.msra.mxu0 0.0
    %269 = vmatprep.subr.mxu0 0.0
    %270 = vmatpush1.msra.mxu0 0.0
    %271 = vmatprep.subr.mxu0 0.0
    %272 = vmatpush1.msra.mxu0 0.0
    %273 = vmatprep.subr.mxu0 0.0
    %274 = vmatpush1.msra.mxu0 0.0
    %275 = vmatprep.subr.mxu0 0.0
    %276 = vmatpush1.msra.mxu0 0.0
    %277 = vmatprep.subr.mxu0 0.0
    %278 = vmatpush1.msra.mxu0 0.0
    %279 = vmatprep.subr.mxu0 0.0
    %280 = vmatpush1.msra.mxu0 0.0
    %281 = vmatprep.subr.mxu0 0.0
    %282 = vmatpush1.msra.mxu0 0.0
    %283 = vmatprep.mubr.f32.mxu0 0.0
    %284 = vmatmul.mubr.f32.gmra.mrb[0].mxu0 %v214
    %v285 = vpop.f32.mrb[0].mxu0
    %v286 = vadd.f32 %v218, %v285
    %v287 = vpop.f32.mrb[0].mxu0
    %288 = vdwg.mxu0
    %vm289 = vcmask 31744
    %290 = vst.msk [vmem:[%s2] sm:$0xff] %vm289, %v286
    // Predicated region
    $region14: #{dqn_forward.1} parent=1 // pred_check
      _
    $region15: #{dqn_forward.1} parent=1 // pred_check_branch
      %292 = sbr.rel (0) target = $region17
    $region16: #{dqn_forward.1} parent=1 // pred_region
      _
    $region17: #{dqn_forward.1} parent=1 // pred_fallthru
      _
    // Predicated region
    $region18: #{dqn_forward.1} parent=1 // pred_check
      _
    $region19: #{dqn_forward.1} parent=1 // pred_check_branch
      %294 = sbr.rel (0) target = $region21
    $region20: #{dqn_forward.1} parent=1 // pred_region
      _
    $region21: #{dqn_forward.1} parent=1 // pred_fallthru
      _
    %295 = vsyncpa [#allocation3], 1

</llo_original>
